<compile_context>
chip_gen: v5e
topology: v5e:2x2
jax: 0.10.0
libtpu: 0.0.40
codegen_flags: <defaults>
</compile_context>

<pallas_src>
import functools

import numpy as np
import jax
import jax.numpy as jnp
from jax.experimental import pallas as pl
from jax.experimental.pallas import tpu as pltpu


def _round_up(v, m):
    return (v + m - 1) // m * m


def _cdiv(a, b):
    return (a + b - 1) // b


def _vmem_capacity_bytes():
    # Physical VMEM per TensorCore: v5e/v6e = 128 MiB, v7x = 64 MiB.
    # Fall back to the most conservative value if the query is unavailable.
    try:
        return int(pltpu.get_tpu_info().vmem_capacity_bytes)
    except Exception:
        return 64 << 20


def _choose_tiles(B, C, itemsize, temp_budget, sub):
    """Pick (batch_tile, class_tile) for the streaming kernel."""
    # ~6 live f32 (TB, TC) temporaries + double-buffered native-dtype x tile.
    bpc = 6 * 4 + 2 * itemsize

    # Batch tile: large enough to amortize the ~0.35 us/step grid overhead,
    # but split so the "parallel" batch axis has >= 2 steps whenever B allows
    # (v7x megacore); a no-op concern on single-TC v5e/v6e.
    if B <= sub:
        tb = B
    else:
        tb = min(512, max(sub, _round_up(_cdiv(B, 2), sub)))

    # Class tile: full C when the (TB, C) working set fits the temp budget;
    # otherwise chunk classes (multiples of 128 lanes) and reduce online.
    full_max_tb = (temp_budget // (C * bpc)) // sub * sub
    if C <= 128 or full_max_tb >= min(tb, 128):
        tc = C
        if tb > sub and tb * C * bpc > temp_budget:
            tb = max(sub, full_max_tb)
    else:
        tb = min(tb, 256)
        tc = min(_round_up(C, 128),
                 max(128, (temp_budget // (tb * bpc)) // 128 * 128))
    return tb, tc


def _ldam_loss_kernel(x_ref, tgt_ref, m_ref, out_ref, m_sc, l_sc, zt_sc,
                      *, s, n_valid, n_classes, tb, tc, col_mask):
    bi = pl.program_id(0)          # batch tile   (parallel)
    ci = pl.program_id(1)          # class chunk  (sequential reduction, last)

    @pl.when(ci == 0)
    def _():
        m_sc[...] = jnp.full_like(m_sc, -jnp.inf)
        l_sc[...] = jnp.zeros_like(l_sc)
        zt_sc[...] = jnp.zeros_like(zt_sc)

    x = x_ref[...].astype(jnp.float32)          # (TB, TC), upcast in-kernel
    tgt = tgt_ref[...]                          # (TB, 1)  int32
    m_list = m_ref[...]                         # (1, TC)  float32
    TB, TC = x.shape

    # scatter_(1, target, 1) -> boolean target mask via 2-D iota compare.
    cls_ids = ci * tc + jax.lax.broadcasted_iota(jnp.int32, (TB, TC), 1)
    mask = cls_ids == tgt

    # Folded margin: z = s*(x - m_list[target]*onehot)
    #              == s*where(mask, x - batch_m, x)   (bit-identical)
    z = s * (x - jnp.where(mask, m_list, 0.0))
    if col_mask:
        # Ragged last class chunk: neutralize out-of-range class columns.
        z = jnp.where(cls_ids < n_classes, z, -jnp.inf)

    # Online (chunked) logsumexp + running target-logit accumulation.
    m_prev = m_sc[...]
    m_new = jnp.maximum(m_prev, jnp.max(z, axis=1, keepdims=True))
    l_sc[...] = l_sc[...] * jnp.exp(m_prev - m_new) + jnp.sum(
        jnp.exp(z - m_new), axis=1, keepdims=True)
    zt_sc[...] = zt_sc[...] + jnp.sum(jnp.where(mask, z, 0.0),
                                      axis=1, keepdims=True)
    m_sc[...] = m_new

    @pl.when(ci == pl.num_programs(1) - 1)
    def _():
        row_loss = m_sc[...] + jnp.log(l_sc[...]) - zt_sc[...]     # (TB, 1)
        # Mask rows past the real batch end (ragged last batch block: contents
        # past the array end are undefined; the select stops NaN/Inf leaking).
        row_idx = bi * tb + jax.lax.broadcasted_iota(jnp.int32, (TB, 1), 0)
        partial = jnp.sum(jnp.where(row_idx < n_valid, row_loss, 0.0))
        out_ref[...] = jnp.full((1, 8, 128), partial, dtype=jnp.float32)


def ldam_loss(x, target, m_list, s=30.0, tile_c=None):
    """Pallas TPU implementation of LDAMLoss.forward (weight=None)."""
    # TODO(synk): per-class `weight` for F.cross_entropy is None in this
    # config; weighted reduction is not implemented.
    # TODO(synk): forward-only (no custom_vjp), so jax.grad will not work.
    B, C = x.shape

    # Sublane granularity: 8 rows for 4-byte dtypes, 16 for 2-byte (bf16/f16).
    sub = 16 if x.dtype.itemsize == 2 else 8

    # Generation-aware budgets: v5e/v6e (128 MiB VMEM) -> 64 MiB limit / 32 MiB
    # temps; v7x (64 MiB VMEM) -> 48 MiB limit / 24 MiB temps.
    vmem_cap = _vmem_capacity_bytes()
    cap_limit = min(64 << 20, max(32 << 20, vmem_cap - (16 << 20)))
    temp_budget = min(32 << 20, cap_limit // 2)

    TB, TC = _choose_tiles(B, C, x.dtype.itemsize, temp_budget, sub)
    if tile_c is not None:                     # test/override hook
        TC = C if int(tile_c) >= C else max(128, (int(tile_c) // 128) * 128)

    nb = _cdiv(B, TB)                          # ragged last block allowed
    nc = _cdiv(C, TC)
    col_mask = (C % TC) != 0

    # No batch pad of x (ragged last block handled in-kernel); target is tiny.
    tgt = target.reshape(-1, 1).astype(jnp.int32)     # (B, 1)
    m = m_list.reshape(1, C).astype(jnp.float32)      # (1, C)

    # Explicit VMEM budget: double-buffered input tile + f32 temps + slack.
    x_bytes = 2 * TB * TC * x.dtype.itemsize
    tmp_bytes = 6 * TB * TC * 4
    side_bytes = 2 * (TB + TC) * 4 + 3 * TB * 4 + 2 * 8 * 128 * 4
    vmem_limit = int(min(cap_limit,
                         max(16 << 20,
                             x_bytes + tmp_bytes + side_bytes + (4 << 20))))

    kernel = functools.partial(
        _ldam_loss_kernel, s=float(s), n_valid=B, n_classes=C,
        tb=TB, tc=TC, col_mask=col_mask)

    partials = pl.pallas_call(
        kernel,
        out_shape=jax.ShapeDtypeStruct((nb, 8, 128), jnp.float32),
        grid=(nb, nc),
        in_specs=[
            pl.BlockSpec((TB, TC), lambda i, k: (i, k)),   # x tile (pipelined)
            pl.BlockSpec((TB, 1), lambda i, k: (i, 0)),    # target tile
            pl.BlockSpec((1, TC), lambda i, k: (0, k)),    # m_list chunk
        ],
        out_specs=pl.BlockSpec((1, 8, 128), lambda i, k: (i, 0, 0)),
        scratch_shapes=[
            pltpu.VMEM((TB, 1), jnp.float32),   # running max
            pltpu.VMEM((TB, 1), jnp.float32),   # running sum-exp
            pltpu.VMEM((TB, 1), jnp.float32),   # running target logit
        ],
        compiler_params=pltpu.CompilerParams(
            dimension_semantics=("parallel", "arbitrary"),
            vmem_limit_bytes=vmem_limit,
        ),
    )(x, tgt, m)

    # Final mean reduction over real (unpadded) rows in the wrapper.
    return jnp.sum(partials[:, 0, 0]) / B


def make_m_list(cls_num_list, max_m=0.5):
    # Deterministic parameter setup mirroring LDAMLoss.__init__.
    m = 1.0 / np.sqrt(np.sqrt(np.asarray(cls_num_list, dtype=np.float64)))
    m = m * (max_m / np.max(m))
    return jnp.asarray(m, dtype=jnp.float32)


def _ref_ldam_loss(x, target, m_list, s=30.0):
    # Pure-JAX reference mirroring the PyTorch forward (weight=None).
    x = x.astype(jnp.float32)
    onehot = jax.nn.one_hot(target, x.shape[1], dtype=jnp.float32)
    batch_m = jnp.sum(onehot * m_list[None, :], axis=1, keepdims=True)
    out = jnp.where(onehot > 0, x - batch_m, x)
    z = s * out
    lse = jax.scipy.special.logsumexp(z, axis=1)
    z_t = jnp.sum(onehot * z, axis=1)
    return jnp.mean(lse - z_t)


if __name__ == "__main__":
    key = jax.random.PRNGKey(0)
    k1, k2, k3, k4 = jax.random.split(key, 4)

    # Case 1: small dense shape (batch=8, classes=16), long-tailed counts.
    B, C = 8, 16
    cls_num_list = [500, 300, 200, 120, 80, 60, 40, 30, 20, 15, 10, 8, 6, 4, 3, 2]
    m_list = make_m_list(cls_num_list, max_m=0.5)
    x = jax.random.normal(k1, (B, C), dtype=jnp.float32)
    target = jax.random.randint(k2, (B,), 0, C, dtype=jnp.int32)
    loss = ldam_loss(x, target, m_list, s=30.0)
    jax.block_until_ready(loss)
    np.testing.assert_allclose(np.asarray(loss),
                               np.asarray(_ref_ldam_loss(x, target, m_list, s=30.0)),
                               rtol=1e-4, atol=1e-4)

    # Case 2: ragged batch (B=13 -> 2 batch tiles, last one partial, no pad).
    B2, C2 = 13, 200
    m_list2 = make_m_list(np.linspace(400.0, 2.0, C2), max_m=0.5)
    x2 = jax.random.normal(k3, (B2, C2), dtype=jnp.float32)
    t2 = jax.random.randint(k4, (B2,), 0, C2, dtype=jnp.int32)
    loss2 = ldam_loss(x2, t2, m_list2, s=30.0)
    jax.block_until_ready(loss2)
    np.testing.assert_allclose(np.asarray(loss2),
                               np.asarray(_ref_ldam_loss(x2, t2, m_list2, s=30.0)),
                               rtol=1e-4, atol=1e-4)

    # Case 3: forced class chunking (TC=128 over C=200) to exercise the
    # online-softmax reduction with a ragged last class chunk.
    loss3 = ldam_loss(x2, t2, m_list2, s=30.0, tile_c=128)
    jax.block_until_ready(loss3)
    np.testing.assert_allclose(np.asarray(loss3),
                               np.asarray(_ref_ldam_loss(x2, t2, m_list2, s=30.0)),
                               rtol=1e-4, atol=1e-4)

    # Case 4: bf16 logits kept native in HBM, upcast in-kernel.
    x4 = x.astype(jnp.bfloat16)
    loss4 = ldam_loss(x4, target, m_list, s=30.0)
    jax.block_until_ready(loss4)
    np.testing.assert_allclose(np.asarray(loss4),
                               np.asarray(_ref_ldam_loss(x4, target, m_list, s=30.0)),
                               rtol=1e-4, atol=1e-4)

    print("KERNEL_OK")
</pallas_src>

<mosaic_0001>
module attributes {stable_mosaic.version = 11 : i64} {
  func.func @_ldam_loss_kernel(%arg0: i32, %arg1: i32, %arg2: memref<8x16xf32, #tpu.memory_space<vmem>>, %arg3: memref<8x1xi32, #tpu.memory_space<vmem>>, %arg4: memref<1x16xf32, #tpu.memory_space<vmem>>, %arg5: memref<1x8x128xf32, #tpu.memory_space<vmem>>, %arg6: memref<8x1xf32, #tpu.memory_space<vmem>>, %arg7: memref<8x1xf32, #tpu.memory_space<vmem>>, %arg8: memref<8x1xf32, #tpu.memory_space<vmem>>) attributes {dimension_semantics = [#tpu.dimension_semantics<parallel>, #tpu.dimension_semantics<arbitrary>], iteration_bounds = array<i64: 1, 1>, scalar_prefetch = 0 : i64, scratch_operands = 3 : i64, tpu.core_type = #tpu.core_type<tc>, window_params = [{transform_indices = @transform_0, window_bounds = array<i64: 8, 16>}, {transform_indices = @transform_1, window_bounds = array<i64: 8, 1>}, {transform_indices = @transform_2, window_bounds = array<i64: 1, 16>}, {transform_indices = @transform_3, window_bounds = array<i64: 1, 8, 128>}]} {
    %c0_i32 = arith.constant 0 : i32
    %0 = arith.cmpi eq, %arg1, %c0_i32 : i32
    %1 = arith.extui %0 : i1 to i32
    %c0_i32_0 = arith.constant 0 : i32
    %2 = arith.cmpi ne, %1, %c0_i32_0 : i32
    scf.if %2 {
      %cst_25 = arith.constant 0xFF800000 : f32
      %45 = vector.broadcast %cst_25 : f32 to vector<8x1xf32>
      %c0_26 = arith.constant 0 : index
      %c0_27 = arith.constant 0 : index
      %46 = vector.load %arg6[%c0_26, %c0_27] : memref<8x1xf32, #tpu.memory_space<vmem>>, vector<8x1xf32>
      tpu.vector_store %arg6[%c0_26, %c0_27], %45 {strides = array<i32>} : memref<8x1xf32, #tpu.memory_space<vmem>>, vector<8x1xf32>,
      %cst_28 = arith.constant 0.000000e+00 : f32
      %47 = vector.broadcast %cst_28 : f32 to vector<8x1xf32>
      %c0_29 = arith.constant 0 : index
      %c0_30 = arith.constant 0 : index
      %48 = vector.load %arg7[%c0_29, %c0_30] : memref<8x1xf32, #tpu.memory_space<vmem>>, vector<8x1xf32>
      tpu.vector_store %arg7[%c0_29, %c0_30], %47 {strides = array<i32>} : memref<8x1xf32, #tpu.memory_space<vmem>>, vector<8x1xf32>,
      %cst_31 = arith.constant 0.000000e+00 : f32
      %49 = vector.broadcast %cst_31 : f32 to vector<8x1xf32>
      %c0_32 = arith.constant 0 : index
      %c0_33 = arith.constant 0 : index
      %50 = vector.load %arg8[%c0_32, %c0_33] : memref<8x1xf32, #tpu.memory_space<vmem>>, vector<8x1xf32>
      tpu.vector_store %arg8[%c0_32, %c0_33], %49 {strides = array<i32>} : memref<8x1xf32, #tpu.memory_space<vmem>>, vector<8x1xf32>,
    } else {
    }
    %c0 = arith.constant 0 : index
    %c0_1 = arith.constant 0 : index
    %3 = vector.load %arg2[%c0, %c0_1] : memref<8x16xf32, #tpu.memory_space<vmem>>, vector<8x16xf32>
    %c0_2 = arith.constant 0 : index
    %c0_3 = arith.constant 0 : index
    %4 = vector.load %arg3[%c0_2, %c0_3] : memref<8x1xi32, #tpu.memory_space<vmem>>, vector<8x1xi32>
    %c0_4 = arith.constant 0 : index
    %c0_5 = arith.constant 0 : index
    %5 = vector.load %arg4[%c0_4, %c0_5] : memref<1x16xf32, #tpu.memory_space<vmem>>, vector<1x16xf32>
    %c16_i32 = arith.constant 16 : i32
    %6 = arith.muli %arg1, %c16_i32 : i32
    %7 = tpu.iota {dimensions = array<i32: 1>} : vector<8x16xi32>
    %8 = vector.broadcast %6 : i32 to vector<8x16xi32>
    %9 = arith.addi %8, %7 : vector<8x16xi32>
    %10 = vector.broadcast %4 : vector<8x1xi32> to vector<8x16xi32>
    %11 = arith.cmpi eq, %9, %10 : vector<8x16xi32>
    %cst = arith.constant 0.000000e+00 : f32
    %12 = vector.shape_cast %5 : vector<1x16xf32> to vector<1x16xf32>
    %13 = vector.broadcast %12 : vector<1x16xf32> to vector<8x16xf32>
    %14 = vector.broadcast %cst : f32 to vector<8x16xf32>
    %15 = arith.select %11, %13, %14 : vector<8x16xi1>, vector<8x16xf32>
    %16 = arith.subf %3, %15 : vector<8x16xf32>
    %cst_6 = arith.constant 3.000000e+01 : f32
    %17 = vector.broadcast %cst_6 : f32 to vector<8x16xf32>
    %18 = arith.mulf %17, %16 : vector<8x16xf32>
    %c0_7 = arith.constant 0 : index
    %c0_8 = arith.constant 0 : index
    %19 = vector.load %arg6[%c0_7, %c0_8] : memref<8x1xf32, #tpu.memory_space<vmem>>, vector<8x1xf32>
    %cst_9 = arith.constant dense<0xFF800000> : vector<8xf32>
    %20 = vector.multi_reduction <maximumf>, %18, %cst_9 [1] : vector<8x16xf32> to vector<8xf32>
    %21 = vector.shape_cast %20 : vector<8xf32> to vector<8x1xf32>
    %22 = arith.maximumf %19, %21 : vector<8x1xf32>
    %c0_10 = arith.constant 0 : index
    %c0_11 = arith.constant 0 : index
    %23 = vector.load %arg7[%c0_10, %c0_11] : memref<8x1xf32, #tpu.memory_space<vmem>>, vector<8x1xf32>
    %24 = arith.subf %19, %22 : vector<8x1xf32>
    %25 = math.exp %24 : vector<8x1xf32>
    %26 = arith.mulf %23, %25 : vector<8x1xf32>
    %27 = vector.broadcast %22 : vector<8x1xf32> to vector<8x16xf32>
    %28 = arith.subf %18, %27 : vector<8x16xf32>
    %29 = math.exp %28 : vector<8x16xf32>
    %cst_12 = arith.constant dense<0.000000e+00> : vector<8xf32>
    %30 = vector.multi_reduction <add>, %29, %cst_12 [1] : vector<8x16xf32> to vector<8xf32>
    %31 = vector.shape_cast %30 : vector<8xf32> to vector<8x1xf32>
    %32 = arith.addf %26, %31 : vector<8x1xf32>
    %c0_13 = arith.constant 0 : index
    %c0_14 = arith.constant 0 : index
    %33 = vector.load %arg7[%c0_13, %c0_14] : memref<8x1xf32, #tpu.memory_space<vmem>>, vector<8x1xf32>
    tpu.vector_store %arg7[%c0_13, %c0_14], %32 {strides = array<i32>} : memref<8x1xf32, #tpu.memory_space<vmem>>, vector<8x1xf32>,
    %c0_15 = arith.constant 0 : index
    %c0_16 = arith.constant 0 : index
    %34 = vector.load %arg8[%c0_15, %c0_16] : memref<8x1xf32, #tpu.memory_space<vmem>>, vector<8x1xf32>
    %cst_17 = arith.constant 0.000000e+00 : f32
    %35 = vector.broadcast %cst_17 : f32 to vector<8x16xf32>
    %36 = arith.select %11, %18, %35 : vector<8x16xi1>, vector<8x16xf32>
    %cst_18 = arith.constant dense<0.000000e+00> : vector<8xf32>
    %37 = vector.multi_reduction <add>, %36, %cst_18 [1] : vector<8x16xf32> to vector<8xf32>
    %38 = vector.shape_cast %37 : vector<8xf32> to vector<8x1xf32>
    %39 = arith.addf %34, %38 : vector<8x1xf32>
    %c0_19 = arith.constant 0 : index
    %c0_20 = arith.constant 0 : index
    %40 = vector.load %arg8[%c0_19, %c0_20] : memref<8x1xf32, #tpu.memory_space<vmem>>, vector<8x1xf32>
    tpu.vector_store %arg8[%c0_19, %c0_20], %39 {strides = array<i32>} : memref<8x1xf32, #tpu.memory_space<vmem>>, vector<8x1xf32>,
    %c0_21 = arith.constant 0 : index
    %c0_22 = arith.constant 0 : index
    %41 = vector.load %arg6[%c0_21, %c0_22] : memref<8x1xf32, #tpu.memory_space<vmem>>, vector<8x1xf32>
    tpu.vector_store %arg6[%c0_21, %c0_22], %22 {strides = array<i32>} : memref<8x1xf32, #tpu.memory_space<vmem>>, vector<8x1xf32>,
    %c0_i32_23 = arith.constant 0 : i32
    %42 = arith.cmpi eq, %arg1, %c0_i32_23 : i32
    %43 = arith.extui %42 : i1 to i32
    %c0_i32_24 = arith.constant 0 : i32
    %44 = arith.cmpi ne, %43, %c0_i32_24 : i32
    scf.if %44 {
      %c0_25 = arith.constant 0 : index
      %c0_26 = arith.constant 0 : index
      %45 = vector.load %arg6[%c0_25, %c0_26] : memref<8x1xf32, #tpu.memory_space<vmem>>, vector<8x1xf32>
      %c0_27 = arith.constant 0 : index
      %c0_28 = arith.constant 0 : index
      %46 = vector.load %arg7[%c0_27, %c0_28] : memref<8x1xf32, #tpu.memory_space<vmem>>, vector<8x1xf32>
      %47 = math.log %46 : vector<8x1xf32>
      %48 = arith.addf %45, %47 : vector<8x1xf32>
      %c0_29 = arith.constant 0 : index
      %c0_30 = arith.constant 0 : index
      %49 = vector.load %arg8[%c0_29, %c0_30] : memref<8x1xf32, #tpu.memory_space<vmem>>, vector<8x1xf32>
      %50 = arith.subf %48, %49 : vector<8x1xf32>
      %c8_i32 = arith.constant 8 : i32
      %51 = arith.muli %arg0, %c8_i32 : i32
      %52 = tpu.iota {dimensions = array<i32: 0>} : vector<8x1xi32>
      %53 = vector.broadcast %51 : i32 to vector<8x1xi32>
      %54 = arith.addi %53, %52 : vector<8x1xi32>
      %c8_i32_31 = arith.constant 8 : i32
      %55 = vector.broadcast %c8_i32_31 : i32 to vector<8x1xi32>
      %56 = arith.cmpi slt, %54, %55 : vector<8x1xi32>
      %cst_32 = arith.constant 0.000000e+00 : f32
      %57 = vector.broadcast %cst_32 : f32 to vector<8x1xf32>
      %58 = arith.select %56, %50, %57 : vector<8x1xi1>, vector<8x1xf32>
      %59 = vector.shape_cast %58 : vector<8x1xf32> to vector<1x8x1xf32>
      %cst_33 = arith.constant dense<0.000000e+00> : vector<1xf32>
      %60 = vector.multi_reduction <add>, %59, %cst_33 [1, 2] : vector<1x8x1xf32> to vector<1xf32>
      %61 = vector.shape_cast %60 : vector<1xf32> to vector<1x1x1xf32>
      %62 = vector.extract %61[0, 0, 0] : f32 from vector<1x1x1xf32>
      %63 = vector.broadcast %62 : f32 to vector<1x8x128xf32>
      %c0_34 = arith.constant 0 : index
      %c0_35 = arith.constant 0 : index
      %c0_36 = arith.constant 0 : index
      %64 = vector.load %arg5[%c0_34, %c0_35, %c0_36] : memref<1x8x128xf32, #tpu.memory_space<vmem>>, vector<1x8x128xf32>
      tpu.vector_store %arg5[%c0_34, %c0_35, %c0_36], %63 {strides = array<i32>} : memref<1x8x128xf32, #tpu.memory_space<vmem>>, vector<1x8x128xf32>,
    } else {
    }
    return
  }
  func.func @transform_0(%arg0: i32, %arg1: i32) -> (i32, i32) {
    %c0_i32 = arith.constant 0 : i32
    return %arg0, %arg1 : i32, i32
  }
  func.func @transform_1(%arg0: i32, %arg1: i32) -> (i32, i32) {
    %c0_i32 = arith.constant 0 : i32
    %c0_i32_0 = arith.constant 0 : i32
    return %arg0, %c0_i32 : i32, i32
  }
  func.func @transform_2(%arg0: i32, %arg1: i32) -> (i32, i32) {
    %c0_i32 = arith.constant 0 : i32
    %c0_i32_0 = arith.constant 0 : i32
    return %c0_i32, %arg1 : i32, i32
  }
  func.func @transform_3(%arg0: i32, %arg1: i32) -> (i32, i32, i32) {
    %c0_i32 = arith.constant 0 : i32
    %c0_i32_0 = arith.constant 0 : i32
    %c0_i32_1 = arith.constant 0 : i32
    return %arg0, %c0_i32, %c0_i32_0 : i32, i32, i32
  }
}

</mosaic_0001>

<llo_original>
// kernel: tpu_custom_call.1
$region0: #{tpu_custom_call.1}
  #allocation0 [shape = 'u32[]', space=smem, size = 0x4, offset = 0x4, fixed_abs, tag = 'smem constant byte address 0x4 - core index']
  #allocation1 [shape = 'u32[72,128]{1,0:T(1,128)}', space=vmem, size = 0x9000, scoped, tag = 'internal scratch']
  #allocation2 [shape = 'f32[8,1]{1,0:T(8,128)}', space=vmem, size = 0x1000, scoped, tag = 'scratch operand']
  #allocation3 [shape = 'f32[8,1]{1,0:T(8,128)}', space=vmem, size = 0x1000, scoped, tag = 'scratch operand']
  #allocation4 [shape = 'f32[8,1]{1,0:T(8,128)}', space=vmem, size = 0x1000, scoped, tag = 'scratch operand']
  %s0 = inlined_call_operand.vmem [shape: f32[8,16], index: 0, kind: input, shape index: {}]
  %s1 = inlined_call_operand.vmem [shape: s32[8,1], index: 1, kind: input, shape index: {}]
  %s2 = inlined_call_operand.vmem [shape: f32[1,16], index: 2, kind: input, shape index: {}]
  %s3 = inlined_call_operand.hbm [shape: f32[1,8,128], index: 3, kind: output, shape index: {}]
  %s4 = sld [smem:[#allocation0]]
  $region30: #{tpu_custom_call.1} parent=0
    _
  %s6 = ssub.s32 1, %s4
  %s7 = scalar_select 0, %s6, %s4
  $region1: #{tpu_custom_call.1} parent=0
    #allocation5 [shape = 'u8[4096]{0}', space=vmem, size = 0x1000, scoped, tag = 'output window, operand 0, single buffered']
    #allocation6 [shape = 's32[1]{0}', space=sflag, size = 0x4, scoped, tag = 'scoped memory for tpu_custom_call.1']
    %8 = vsyncpa [#allocation6], 0
    // Predicated region
    $region2: #{tpu_custom_call.1} parent=1 // pred_check
      _
    $region3: #{tpu_custom_call.1} parent=1 // pred_check_branch
      %10 = sbr.rel (0) target = $region5
    $region4: #{tpu_custom_call.1} parent=1 // pred_region
      _
    $region5: #{tpu_custom_call.1} parent=1 // pred_fallthru
      _
    // Predicated region
    $region6: #{tpu_custom_call.1} parent=1 // pred_check
      _
    $region7: #{tpu_custom_call.1} parent=1 // pred_check_branch
      %12 = sbr.rel (0) target = $region9
    $region8: #{tpu_custom_call.1} parent=1 // pred_region
      _
    $region9: #{tpu_custom_call.1} parent=1 // pred_fallthru
      _
    // Predicated region
    $region10: #{tpu_custom_call.1} parent=1 // pred_check
      _
    $region11: #{tpu_custom_call.1} parent=1 // pred_check_branch
      %14 = sbr.rel (0) target = $region13
    $region12: #{tpu_custom_call.1} parent=1 // pred_region
      _
    $region13: #{tpu_custom_call.1} parent=1 // pred_fallthru
      _
    %p15 = scmp.eq.s32.totalorder 0, 0
    // Predicated region
    $region14: #{tpu_custom_call.1} parent=1 // pred_check
      %p16 = pneg %p15
    $region15: #{tpu_custom_call.1} parent=1 // pred_check_branch
      %18 = sbr.rel (%p16) target = $region17
    $region16: #{tpu_custom_call.1} parent=1 // pred_region
      %vm19 = vcmask 7168
      %20 = vst.msk [vmem:[#allocation2] sm:$0xff] %vm19, -inf
      %21 = vst.msk [vmem:[#allocation3] sm:$0xff] %vm19, 0.0
      %22 = vst.msk [vmem:[#allocation4] sm:$0xff] %vm19, 0.0
    $region17: #{tpu_custom_call.1} parent=1 // pred_fallthru
      _
    %v23 = vld [vmem:[%s0] sm:$0xff]
    %v24 = vld [vmem:[%s1] sm:$0xff]
    %v25 = vld [vmem:[%s2] sm:$0x1]
    %s26 = smul.u32 0, 16
    %v27 = vlaneseq
    %v28 = vand.u32 %v27, 127
    %v29 = vstv %s26
    %v30 = vadd.s32 %v29, %v28
    %31 = vset.pattern.permute.xlu0 0
    %32 = vperm.xlu0 %31, %v24
    %v33 = vpop.permute.xlu0 %32
    %vm34 = vcmp.eq.s32.totalorder %v30, %v33
    %v36 = vperm.slane %v25, 0
    %v38 = vsel %vm34, %v36, 0.0
    %v39 = vsub.f32 %v23, %v38
    %v40 = vmul.f32 %v39, 30.0
    %v41 = vld [vmem:[#allocation2] sm:$0xff]
    %vm42 = vcmask 130048
    %v43 = vsel %vm42, %v40, -inf
    %44 = vmax.xlane.f32.xlu0 %v43
    %v45 = vpop.xlane.xlu0 %44
    %v46 = vmax.f32 %v41, %v45
    %v47 = vld [vmem:[#allocation3] sm:$0xff]
    %v48 = vsub.f32 %v41, %v46
    %v49 = vmul.f32 %v48, 1.442695
    %v50 = vpow.pop %v49
    %v51 = vmul.f32 %v47, %v50
    %53 = vset.pattern.permute.xlu0 0
    %54 = vperm.xlu0 %53, %v46
    %v55 = vpop.permute.xlu0 %54
    %v57 = vsub.f32 %v40, %v55
    %v58 = vmul.f32 %v57, 1.442695
    %v59 = vpow.pop %v58
    %v60 = vsel %vm42, %v59, 0.0
    %61 = vadd.xlane.f32.xlu0 %v60
    %v62 = vpop.xlane.xlu0 %61
    %v63 = vadd.f32 %v51, %v62
    %vm64 = vcmask 7168
    %65 = vst.msk [vmem:[#allocation3] sm:$0xff] %vm64, %v63
    %v66 = vld [vmem:[#allocation4] sm:$0xff]
    %v67 = vsel %vm34, %v40, 0.0
    %v68 = vsel %vm42, %v67, 0.0
    %69 = vadd.xlane.f32.xlu0 %v68
    %v70 = vpop.xlane.xlu0 %69
    %v71 = vadd.f32 %v66, %v70
    %72 = vst.msk [vmem:[#allocation4] sm:$0xff] %vm64, %v71
    %73 = vst.msk [vmem:[#allocation2] sm:$0xff] %vm64, %v46
    // Predicated region
    $region18: #{tpu_custom_call.1} parent=1 // pred_check
      %p74 = pneg %p15
    $region19: #{tpu_custom_call.1} parent=1 // pred_check_branch
      %76 = sbr.rel (%p74) target = $region21
    $region20: #{tpu_custom_call.1} parent=1 // pred_region
      %v77 = vld [vmem:[#allocation2] sm:$0xff]
      %v78 = vld [vmem:[#allocation3] sm:$0xff]
      %v79 = vlog2.pop %v78
      %v80 = vmul.f32 %v79, 0.6931472
      %v81 = vadd.f32 %v77, %v80
      %v82 = vld [vmem:[#allocation4] sm:$0xff]
      %v83 = vsub.f32 %v81, %v82
      %s84 = smul.u32 0, 8
      %v85 = vlaneseq
      %v86 = vshrl.u32 %v85, 7
      %v87 = vstv %s84
      %v88 = vadd.s32 %v87, %v86
      %vm89 = vcmp.lt.s32.totalorder %v88, 8
      %v90 = vsel %vm89, %v83, 0.0
      %v91 = vsel %vm64, %v90, 0.0
      %92 = vadd.xlane.f32.xlu0 %v91
      %v93 = vpop.xlane.xlu0 %92
      %v94 = vrot.slane %v93, 4
      %v95 = vadd.f32 %v93, %v94
      %v96 = vrot.slane %v95, 2
      %v97 = vadd.f32 %v95, %v96
      %v98 = vrot.slane %v97, 1
      %v99 = vadd.f32 %v97, %v98
      %s100 = vtos %v99
      %v101 = vstv %s100
      %102 = vst [vmem:[#allocation5] sm:$0xff] %v101
    $region21: #{tpu_custom_call.1} parent=1 // pred_fallthru
      _
    // Predicated region
    $region22: #{tpu_custom_call.1} parent=1 // pred_check
      _
    $region23: #{tpu_custom_call.1} parent=1 // pred_check_branch
      %104 = sbr.rel (0) target = $region25
    $region24: #{tpu_custom_call.1} parent=1 // pred_region
      %106 = vsyncadd [#allocation6], 0
      %s108 = sshll.u32 [#allocation5], 4
      %s109 = int_to_ptr.vmem [resolvable:$true] %s108
      %s110 = sshll.u32 %s3, 4
      %s111 = int_to_ptr.hbm [resolvable:$true] %s110
      %113 = dma.vmem_to_hbm [thread:$0]  %s109, 128, %s111, [#allocation6]
    $region25: #{tpu_custom_call.1} parent=1 // pred_fallthru
      _
    // Predicated region
    $region26: #{tpu_custom_call.1} parent=1 // pred_check
      _
    $region27: #{tpu_custom_call.1} parent=1 // pred_check_branch
      %115 = sbr.rel (0) target = $region29
    $region28: #{tpu_custom_call.1} parent=1 // pred_region
      %117 = dma.done [#allocation6], 128
    $region29: #{tpu_custom_call.1} parent=1 // pred_fallthru
      _
    %118 = vsyncpa [#allocation6], 1

</llo_original>
